<compile_context>
chip_gen: v7x
topology: tpu7x:2x2x1
jax: 0.10.0
libtpu: 0.0.40
codegen_flags: <defaults>
</compile_context>

<pallas_src>
import jax
import jax.numpy as jnp
import numpy as np
from jax.experimental import pallas as pl
from jax.experimental.pallas import tpu as pltpu

C_OUT = 50            # conv out_channels
K = 7                 # kernel_size
L = 15                # input length
T = L - K + 1         # 9 valid conv positions
R_ROWS = T * C_OUT    # 450 (position, channel) pairs
R_PAD = 512           # rows padded to an MXU / sublane friendly size
L_AUG = L + 1         # 16: 15 taps + a ones row (bias folded into the matmul)
LANES = 128
MAX_TILE = 4096       # samples per grid step
CHUNK = 512           # lanes per in-kernel MXU dot (keeps the [512, chunk] temp small)


def _round_up(a, b):
    return -(-a // b) * b


def _make_kernel(tile):
    # Static chunk boundaries (every boundary is a multiple of 128).
    bounds = []
    lo = 0
    while lo < tile:
        hi = min(lo + CHUNK, tile)
        bounds.append((lo, hi))
        lo = hi

    def kernel(x_ref, w_ref, o_ref):
        # x_ref: [L_AUG, tile]   taps (+ones row) on sublanes, samples on lanes
        # w_ref: [R_PAD, L_AUG]  shifted conv weights, bias in the last column
        # o_ref: [1, tile]       sigmoid(max) per sample, lane-dense
        for lo, hi in bounds:
            xc = x_ref[:, lo:hi]                                     # [16, ch]
            s = jnp.dot(w_ref[...], xc,
                        preferred_element_type=jnp.float32)          # [512, ch] on MXU
            m = jnp.max(s, axis=0, keepdims=True)                    # [1, ch] sublane max
            o_ref[0:1, lo:hi] = 1.0 / (1.0 + jnp.exp(-m))            # sigmoid (EUP exp)

    return kernel


@jax.jit
def conv1_model_forward(x, weight, bias):
    """x: [N, 1, L]; weight: [C_OUT, 1, K]; bias: [C_OUT] -> [N] float32."""
    n = x.shape[0]
    x2 = x[:, 0, :].astype(jnp.float32)                              # [N, L]

    # ---- tile / grid geometry ------------------------------------------------
    n128 = _round_up(n, LANES)
    # >= 2 grid steps whenever possible so both v7x TensorCores get work.
    tile = min(MAX_TILE, max(LANES, _round_up(-(-n128 // 2), LANES)))
    n_pad = _round_up(n128, tile)
    grid = (n_pad // tile,)

    # ---- augmented input: [L+1, n_pad], samples lane-dense ---------------------
    # TODO(synk): the transpose/pad is one small extra HBM pass over x; it could
    # be folded into the kernel (in-kernel transpose) if it ever shows up.
    x_aug = jnp.concatenate([x2.T, jnp.ones((1, n), jnp.float32)], axis=0)
    if n_pad != n:
        x_aug = jnp.pad(x_aug, ((0, 0), (0, n_pad - n)))

    # ---- augmented weights: [R_PAD, L+1] ---------------------------------------
    # Row r = t*C_OUT + c holds w[c, :] at column offset t (zeros elsewhere) and
    # bias[c] in the last column (picked up by the ones row of x).  Padded rows
    # get -1e30 in the bias column so they never win the max.
    w2 = weight[:, 0, :].astype(jnp.float32)                         # [C_OUT, K]
    idx_t = jnp.repeat(jnp.arange(T), C_OUT)                         # [450]
    idx_c = jnp.tile(jnp.arange(C_OUT), T)                           # [450]
    row_idx = jnp.broadcast_to(jnp.arange(R_ROWS)[:, None], (R_ROWS, K))
    col_idx = idx_t[:, None] + jnp.arange(K)[None, :]                # [450, K]
    w_aug = jnp.zeros((R_PAD, L_AUG), jnp.float32)
    w_aug = w_aug.at[row_idx, col_idx].set(w2[idx_c])
    bias_col = jnp.full((R_PAD,), -1e30, jnp.float32).at[:R_ROWS].set(
        bias.astype(jnp.float32)[idx_c])
    w_aug = w_aug.at[:, L].set(bias_col)

    out = pl.pallas_call(
        _make_kernel(tile),
        out_shape=jax.ShapeDtypeStruct((1, n_pad), jnp.float32),
        grid=grid,
        in_specs=[
            pl.BlockSpec((L_AUG, tile), lambda i: (0, i)),           # x slides with grid
            pl.BlockSpec((R_PAD, L_AUG), lambda i: (0, 0)),          # weights resident
        ],
        out_specs=pl.BlockSpec((1, tile), lambda i: (0, i)),
        compiler_params=pltpu.CompilerParams(
            dimension_semantics=("parallel",),
        ),
    )(x_aug, w_aug)

    return out[0, :n]


def _reference_forward(x, weight, bias):
    """Pure-JAX reference of the PyTorch forward (high-precision contraction)."""
    x2 = x[:, 0, :].astype(jnp.float32)                              # [N, L]
    w2 = weight[:, 0, :].astype(jnp.float32)                         # [C, K]
    t_idx = jnp.arange(T)[:, None] + jnp.arange(K)[None, :]
    windows = x2[:, t_idx]                                           # [N, T, K]
    conv = jnp.einsum("ntk,ck->nct", windows, w2,
                      precision=jax.lax.Precision.HIGHEST) + bias[None, :, None]
    return jax.nn.sigmoid(jnp.max(conv, axis=(1, 2)))


if __name__ == "__main__":
    key = jax.random.PRNGKey(0)
    kx, kw, kb = jax.random.split(key, 3)

    n = 16                                                           # x: [N, 1, 15]
    x = jax.random.normal(kx, (n, 1, L), dtype=jnp.float32)
    weight = jax.random.normal(kw, (C_OUT, 1, K), dtype=jnp.float32) * 0.2
    bias = jax.random.normal(kb, (C_OUT,), dtype=jnp.float32) * 0.2

    out = jax.block_until_ready(conv1_model_forward(x, weight, bias))
    ref = jax.block_until_ready(_reference_forward(x, weight, bias))

    # Tolerance accounts for MXU matmul-pass rounding differences between the
    # in-kernel dot and the reference einsum (sigmoid outputs live in [0, 1]).
    if not np.allclose(np.asarray(out), np.asarray(ref), rtol=1e-3, atol=5e-3):
        raise AssertionError(
            "Pallas kernel mismatch, max abs err = "
            f"{np.max(np.abs(np.asarray(out) - np.asarray(ref)))}")
    print("KERNEL_OK")
</pallas_src>

<mosaic_0001>
module attributes {stable_mosaic.version = 11 : i64} {
  func.func @kernel(%arg0: i32, %arg1: memref<16x128xf32, #tpu.memory_space<vmem>>, %arg2: memref<512x16xf32, #tpu.memory_space<vmem>>, %arg3: memref<1x128xf32, #tpu.memory_space<vmem>>) attributes {dimension_semantics = [#tpu.dimension_semantics<parallel>], iteration_bounds = array<i64: 1>, scalar_prefetch = 0 : i64, scratch_operands = 0 : i64, tpu.core_type = #tpu.core_type<tc>, window_params = [{transform_indices = @transform_0, window_bounds = array<i64: 16, 128>}, {pipeline_mode = #tpu.pipeline_mode<synchronous>, transform_indices = @transform_1, window_bounds = array<i64: 512, 16>}, {transform_indices = @transform_2, window_bounds = array<i64: 1, 128>}]} {
    %c0 = arith.constant 0 : index
    %c0_0 = arith.constant 0 : index
    %0 = vector.load %arg1[%c0, %c0_0] : memref<16x128xf32, #tpu.memory_space<vmem>>, vector<16x128xf32>
    %c0_1 = arith.constant 0 : index
    %c0_2 = arith.constant 0 : index
    %1 = vector.load %arg2[%c0_1, %c0_2] : memref<512x16xf32, #tpu.memory_space<vmem>>, vector<512x16xf32>
    %cst = arith.constant dense<0.000000e+00> : vector<512x128xf32>
    %2 = tpu.matmul %1, %0, %cst {dimension_numbers = #tpu.dot_dimension_numbers<[1], [0], [0], [1], [0, 0, 1, 1], [], []>} : vector<512x16xf32>, vector<16x128xf32>, vector<512x128xf32> -> vector<512x128xf32>
    %cst_3 = arith.constant dense<0xFF800000> : vector<128xf32>
    %3 = vector.multi_reduction <maximumf>, %2, %cst_3 [0] : vector<512x128xf32> to vector<128xf32>
    %4 = vector.shape_cast %3 : vector<128xf32> to vector<1x128xf32>
    %cst_4 = arith.constant 0.000000e+00 : f32
    %5 = vector.broadcast %cst_4 : f32 to vector<1x128xf32>
    %6 = arith.subf %5, %4 : vector<1x128xf32>
    %7 = math.exp %6 : vector<1x128xf32>
    %cst_5 = arith.constant 1.000000e+00 : f32
    %8 = vector.broadcast %cst_5 : f32 to vector<1x128xf32>
    %9 = arith.addf %8, %7 : vector<1x128xf32>
    %cst_6 = arith.constant 1.000000e+00 : f32
    %10 = vector.broadcast %cst_6 : f32 to vector<1x128xf32>
    %11 = arith.divf %10, %9 : vector<1x128xf32>
    %c0_7 = arith.constant 0 : index
    %c0_8 = arith.constant 0 : index
    %12 = vector.load %arg3[%c0_7, %c0_8] : memref<1x128xf32, #tpu.memory_space<vmem>>, vector<1x128xf32>
    tpu.vector_store %arg3[%c0_7, %c0_8], %11 {strides = array<i32>} : memref<1x128xf32, #tpu.memory_space<vmem>>, vector<1x128xf32>,
    return
  }
  func.func @transform_0(%arg0: i32) -> (i32, i32) {
    %c0_i32 = arith.constant 0 : i32
    %c0_i32_0 = arith.constant 0 : i32
    return %c0_i32, %arg0 : i32, i32
  }
  func.func @transform_1(%arg0: i32) -> (i32, i32) {
    %c0_i32 = arith.constant 0 : i32
    %c0_i32_0 = arith.constant 0 : i32
    %c0_i32_1 = arith.constant 0 : i32
    return %c0_i32, %c0_i32_0 : i32, i32
  }
  func.func @transform_2(%arg0: i32) -> (i32, i32) {
    %c0_i32 = arith.constant 0 : i32
    %c0_i32_0 = arith.constant 0 : i32
    return %c0_i32, %arg0 : i32, i32
  }
}

</mosaic_0001>

<llo_original>
// kernel: conv1_model_forward.1
$region0: #{conv1_model_forward.1}
  #allocation0 [shape = 'u32[]', space=smem, size = 0x4, offset = 0x4, fixed_abs, tag = 'smem constant byte address 0x4 - core index']
  #allocation1 [shape = 'u32[144,128]{1,0:T(1,128)}', space=vmem, size = 0x12000, scoped, tag = 'internal scratch']
  %s0 = inlined_call_operand.vmem [shape: f32[16,128], index: 0, kind: input, shape index: {}]
  %s1 = inlined_call_operand.vmem [shape: f32[512,16], index: 1, kind: input, shape index: {}]
  %s2 = inlined_call_operand.vmem [shape: f32[1,128], index: 2, kind: output, shape index: {}]
  %s3 = sld [smem:[#allocation0]]
  $region18: #{conv1_model_forward.1} parent=0
    _
  %s5 = ssub.s32 1, %s3
  %s6 = scalar_select 0, %s5, %s3
  // Predicated region
  $region2: #{conv1_model_forward.1} parent=0 // pred_check
    _
  $region3: #{conv1_model_forward.1} parent=0 // pred_check_branch
    %8 = sbr.rel (0) target = $region5
  $region4: #{conv1_model_forward.1} parent=0 // pred_region
    _
  $region5: #{conv1_model_forward.1} parent=0 // pred_fallthru
    _
  // Predicated region
  $region6: #{conv1_model_forward.1} parent=0 // pred_check
    _
  $region7: #{conv1_model_forward.1} parent=0 // pred_check_branch
    %10 = sbr.rel (0) target = $region9
  $region8: #{conv1_model_forward.1} parent=0 // pred_region
    _
  $region9: #{conv1_model_forward.1} parent=0 // pred_fallthru
    _
  %v11 = vld [vmem:[%s0] sm:$0xff]
  %v12 = vld [vmem:[%s0 + $0x8] sm:$0xff]
  %v13 = vld [vmem:[%s1] sm:$0xff]
  %v14 = vld [vmem:[%s1 + $0x8] sm:$0xff]
  %v15 = vld [vmem:[%s1 + $0x10] sm:$0xff]
  %v16 = vld [vmem:[%s1 + $0x18] sm:$0xff]
  %v17 = vld [vmem:[%s1 + $0x20] sm:$0xff]
  %v18 = vld [vmem:[%s1 + $0x28] sm:$0xff]
  %v19 = vld [vmem:[%s1 + $0x30] sm:$0xff]
  %v20 = vld [vmem:[%s1 + $0x38] sm:$0xff]
  %v21 = vld [vmem:[%s1 + $0x40] sm:$0xff]
  %v22 = vld [vmem:[%s1 + $0x48] sm:$0xff]
  %v23 = vld [vmem:[%s1 + $0x50] sm:$0xff]
  %v24 = vld [vmem:[%s1 + $0x58] sm:$0xff]
  %v25 = vld [vmem:[%s1 + $0x60] sm:$0xff]
  %v26 = vld [vmem:[%s1 + $0x68] sm:$0xff]
  %v27 = vld [vmem:[%s1 + $0x70] sm:$0xff]
  %v28 = vld [vmem:[%s1 + $0x78] sm:$0xff]
  %v29 = vld [vmem:[%s1 + $0x80] sm:$0xff]
  %v30 = vld [vmem:[%s1 + $0x88] sm:$0xff]
  %v31 = vld [vmem:[%s1 + $0x90] sm:$0xff]
  %v32 = vld [vmem:[%s1 + $0x98] sm:$0xff]
  %v33 = vld [vmem:[%s1 + $0xa0] sm:$0xff]
  %v34 = vld [vmem:[%s1 + $0xa8] sm:$0xff]
  %v35 = vld [vmem:[%s1 + $0xb0] sm:$0xff]
  %v36 = vld [vmem:[%s1 + $0xb8] sm:$0xff]
  %v37 = vld [vmem:[%s1 + $0xc0] sm:$0xff]
  %v38 = vld [vmem:[%s1 + $0xc8] sm:$0xff]
  %v39 = vld [vmem:[%s1 + $0xd0] sm:$0xff]
  %v40 = vld [vmem:[%s1 + $0xd8] sm:$0xff]
  %v41 = vld [vmem:[%s1 + $0xe0] sm:$0xff]
  %v42 = vld [vmem:[%s1 + $0xe8] sm:$0xff]
  %v43 = vld [vmem:[%s1 + $0xf0] sm:$0xff]
  %v44 = vld [vmem:[%s1 + $0xf8] sm:$0xff]
  %v45 = vld [vmem:[%s1 + $0x100] sm:$0xff]
  %v46 = vld [vmem:[%s1 + $0x108] sm:$0xff]
  %v47 = vld [vmem:[%s1 + $0x110] sm:$0xff]
  %v48 = vld [vmem:[%s1 + $0x118] sm:$0xff]
  %v49 = vld [vmem:[%s1 + $0x120] sm:$0xff]
  %v50 = vld [vmem:[%s1 + $0x128] sm:$0xff]
  %v51 = vld [vmem:[%s1 + $0x130] sm:$0xff]
  %v52 = vld [vmem:[%s1 + $0x138] sm:$0xff]
  %v53 = vld [vmem:[%s1 + $0x140] sm:$0xff]
  %v54 = vld [vmem:[%s1 + $0x148] sm:$0xff]
  %v55 = vld [vmem:[%s1 + $0x150] sm:$0xff]
  %v56 = vld [vmem:[%s1 + $0x158] sm:$0xff]
  %v57 = vld [vmem:[%s1 + $0x160] sm:$0xff]
  %v58 = vld [vmem:[%s1 + $0x168] sm:$0xff]
  %v59 = vld [vmem:[%s1 + $0x170] sm:$0xff]
  %v60 = vld [vmem:[%s1 + $0x178] sm:$0xff]
  %v61 = vld [vmem:[%s1 + $0x180] sm:$0xff]
  %v62 = vld [vmem:[%s1 + $0x188] sm:$0xff]
  %v63 = vld [vmem:[%s1 + $0x190] sm:$0xff]
  %v64 = vld [vmem:[%s1 + $0x198] sm:$0xff]
  %v65 = vld [vmem:[%s1 + $0x1a0] sm:$0xff]
  %v66 = vld [vmem:[%s1 + $0x1a8] sm:$0xff]
  %v67 = vld [vmem:[%s1 + $0x1b0] sm:$0xff]
  %v68 = vld [vmem:[%s1 + $0x1b8] sm:$0xff]
  %v69 = vld [vmem:[%s1 + $0x1c0] sm:$0xff]
  %v70 = vld [vmem:[%s1 + $0x1c8] sm:$0xff]
  %v71 = vld [vmem:[%s1 + $0x1d0] sm:$0xff]
  %v72 = vld [vmem:[%s1 + $0x1d8] sm:$0xff]
  %v73 = vld [vmem:[%s1 + $0x1e0] sm:$0xff]
  %v74 = vld [vmem:[%s1 + $0x1e8] sm:$0xff]
  %v75 = vld [vmem:[%s1 + $0x1f0] sm:$0xff]
  %v76 = vld [vmem:[%s1 + $0x1f8] sm:$0xff]
  %vm77 = vcmask 130048
  %v79 = vsel %vm77, %v13, 0
  %v82 = vsel %vm77, %v14, 0
  %v85 = vsel %vm77, %v15, 0
  %v88 = vsel %vm77, %v16, 0
  %v91 = vsel %vm77, %v17, 0
  %v94 = vsel %vm77, %v18, 0
  %v97 = vsel %vm77, %v19, 0
  %v100 = vsel %vm77, %v20, 0
  %v103 = vsel %vm77, %v21, 0
  %v106 = vsel %vm77, %v22, 0
  %v109 = vsel %vm77, %v23, 0
  %v112 = vsel %vm77, %v24, 0
  %v115 = vsel %vm77, %v25, 0
  %v118 = vsel %vm77, %v26, 0
  %v121 = vsel %vm77, %v27, 0
  %v124 = vsel %vm77, %v28, 0
  %v127 = vsel %vm77, %v29, 0
  %v130 = vsel %vm77, %v30, 0
  %v133 = vsel %vm77, %v31, 0
  %v136 = vsel %vm77, %v32, 0
  %v139 = vsel %vm77, %v33, 0
  %v142 = vsel %vm77, %v34, 0
  %v145 = vsel %vm77, %v35, 0
  %v148 = vsel %vm77, %v36, 0
  %v151 = vsel %vm77, %v37, 0
  %v154 = vsel %vm77, %v38, 0
  %v157 = vsel %vm77, %v39, 0
  %v160 = vsel %vm77, %v40, 0
  %v163 = vsel %vm77, %v41, 0
  %v166 = vsel %vm77, %v42, 0
  %v169 = vsel %vm77, %v43, 0
  %v172 = vsel %vm77, %v44, 0
  %v175 = vsel %vm77, %v45, 0
  %v178 = vsel %vm77, %v46, 0
  %v181 = vsel %vm77, %v47, 0
  %v184 = vsel %vm77, %v48, 0
  %v187 = vsel %vm77, %v49, 0
  %v190 = vsel %vm77, %v50, 0
  %v193 = vsel %vm77, %v51, 0
  %v196 = vsel %vm77, %v52, 0
  %v199 = vsel %vm77, %v53, 0
  %v202 = vsel %vm77, %v54, 0
  %v205 = vsel %vm77, %v55, 0
  %v208 = vsel %vm77, %v56, 0
  %v211 = vsel %vm77, %v57, 0
  %v214 = vsel %vm77, %v58, 0
  %v217 = vsel %vm77, %v59, 0
  %v220 = vsel %vm77, %v60, 0
  %v223 = vsel %vm77, %v61, 0
  %v226 = vsel %vm77, %v62, 0
  %v229 = vsel %vm77, %v63, 0
  %v232 = vsel %vm77, %v64, 0
  %v235 = vsel %vm77, %v65, 0
  %v238 = vsel %vm77, %v66, 0
  %v241 = vsel %vm77, %v67, 0
  %v244 = vsel %vm77, %v68, 0
  %v247 = vsel %vm77, %v69, 0
  %v250 = vsel %vm77, %v70, 0
  %v253 = vsel %vm77, %v71, 0
  %v256 = vsel %vm77, %v72, 0
  %v259 = vsel %vm77, %v73, 0
  %v262 = vsel %vm77, %v74, 0
  %v265 = vsel %vm77, %v75, 0
  %v268 = vsel %vm77, %v76, 0
  %270 = vmatprep.subr.mxu0 0.0
  %271 = vmatpush1.msra.mxu0 %v11
  %272 = vmatprep.subr.mxu0 0.0
  %273 = vmatpush1.msra.mxu0 %v12
  %274 = vmatprep.subr.mxu0 0.0
  %275 = vmatpush1.msra.mxu0 0.0
  %276 = vmatprep.subr.mxu0 0.0
  %277 = vmatpush1.msra.mxu0 0.0
  %278 = vmatprep.subr.mxu0 0.0
  %279 = vmatpush1.msra.mxu0 0.0
  %280 = vmatprep.subr.mxu0 0.0
  %281 = vmatpush1.msra.mxu0 0.0
  %282 = vmatprep.subr.mxu0 0.0
  %283 = vmatpush1.msra.mxu0 0.0
  %284 = vmatprep.subr.mxu0 0.0
  %285 = vmatpush1.msra.mxu0 0.0
  %286 = vmatprep.subr.mxu0 0.0
  %287 = vmatpush1.msra.mxu0 0.0
  %288 = vmatprep.subr.mxu0 0.0
  %289 = vmatpush1.msra.mxu0 0.0
  %290 = vmatprep.subr.mxu0 0.0
  %291 = vmatpush1.msra.mxu0 0.0
  %292 = vmatprep.subr.mxu0 0.0
  %293 = vmatpush1.msra.mxu0 0.0
  %294 = vmatprep.subr.mxu0 0.0
  %295 = vmatpush1.msra.mxu0 0.0
  %296 = vmatprep.subr.mxu0 0.0
  %297 = vmatpush1.msra.mxu0 0.0
  %298 = vmatprep.subr.mxu0 0.0
  %299 = vmatpush1.msra.mxu0 0.0
  %300 = vmatprep.subr.mxu0 0.0
  %301 = vmatpush1.msra.mxu0 0.0
  %302 = vmatprep.subr.mxu0 0.0
  %303 = vmatpush1.msra.mxu0 0.0
  %304 = vmatprep.subr.mxu0 0.0
  %305 = vmatpush1.msra.mxu0 0.0
  %306 = vmatprep.subr.mxu0 0.0
  %307 = vmatpush1.msra.mxu0 0.0
  %308 = vmatprep.subr.mxu0 0.0
  %309 = vmatpush1.msra.mxu0 0.0
  %310 = vmatprep.subr.mxu0 0.0
  %311 = vmatpush1.msra.mxu0 0.0
  %312 = vmatprep.subr.mxu0 0.0
  %313 = vmatpush1.msra.mxu0 0.0
  %314 = vmatprep.subr.mxu0 0.0
  %315 = vmatpush1.msra.mxu0 0.0
  %316 = vmatprep.subr.mxu0 0.0
  %317 = vmatpush1.msra.mxu0 0.0
  %318 = vmatprep.subr.mxu0 0.0
  %319 = vmatpush1.msra.mxu0 0.0
  %320 = vmatprep.subr.mxu0 0.0
  %321 = vmatpush1.msra.mxu0 0.0
  %322 = vmatprep.subr.mxu0 0.0
  %323 = vmatpush1.msra.mxu0 0.0
  %324 = vmatprep.subr.mxu0 0.0
  %325 = vmatpush1.msra.mxu0 0.0
  %326 = vmatprep.subr.mxu0 0.0
  %327 = vmatpush1.msra.mxu0 0.0
  %328 = vmatprep.subr.mxu0 0.0
  %329 = vmatpush1.msra.mxu0 0.0
  %330 = vmatprep.subr.mxu0 0.0
  %331 = vmatpush1.msra.mxu0 0.0
  %332 = vmatprep.subr.mxu0 0.0
  %333 = vmatpush1.msra.mxu0 0.0
  %334 = vmatprep.mubr.f32.mxu0 0.0
  %335 = vmatmul.mubr.f32.gmra.mrb[0].mxu0 %v79
  %v336 = vpop.f32.mrb[0].mxu0
  %v337 = vadd.f32 0.0, %v336
  %v338 = vpop.f32.mrb[0].mxu0
  %339 = vmatprep.mubr.f32.mxu0 0.0
  %340 = vmatmul.mubr.f32.gmra.mrb[0].mxu0 %v82
  %v341 = vpop.f32.mrb[0].mxu0
  %v342 = vadd.f32 0.0, %v341
  %v343 = vpop.f32.mrb[0].mxu0
  %344 = vmatprep.mubr.f32.mxu0 0.0
  %345 = vmatmul.mubr.f32.gmra.mrb[0].mxu0 %v85
  %v346 = vpop.f32.mrb[0].mxu0
  %v347 = vadd.f32 0.0, %v346
  %v348 = vpop.f32.mrb[0].mxu0
  %349 = vmatprep.mubr.f32.mxu0 0.0
  %350 = vmatmul.mubr.f32.gmra.mrb[0].mxu0 %v88
  %v351 = vpop.f32.mrb[0].mxu0
  %v352 = vadd.f32 0.0, %v351
  %v353 = vpop.f32.mrb[0].mxu0
  %354 = vmatprep.mubr.f32.mxu0 0.0
  %355 = vmatmul.mubr.f32.gmra.mrb[0].mxu0 %v91
  %v356 = vpop.f32.mrb[0].mxu0
  %v357 = vadd.f32 0.0, %v356
  %v358 = vpop.f32.mrb[0].mxu0
  %359 = vmatprep.mubr.f32.mxu0 0.0
  %360 = vmatmul.mubr.f32.gmra.mrb[0].mxu0 %v94
  %v361 = vpop.f32.mrb[0].mxu0
  %v362 = vadd.f32 0.0, %v361
  %v363 = vpop.f32.mrb[0].mxu0
  %364 = vmatprep.mubr.f32.mxu0 0.0
  %365 = vmatmul.mubr.f32.gmra.mrb[0].mxu0 %v97
  %v366 = vpop.f32.mrb[0].mxu0
  %v367 = vadd.f32 0.0, %v366
  %v368 = vpop.f32.mrb[0].mxu0
  %369 = vmatprep.mubr.f32.mxu0 0.0
  %370 = vmatmul.mubr.f32.gmra.mrb[0].mxu0 %v100
  %v371 = vpop.f32.mrb[0].mxu0
  %v372 = vadd.f32 0.0, %v371
  %v373 = vpop.f32.mrb[0].mxu0
  %374 = vmatprep.mubr.f32.mxu0 0.0
  %375 = vmatmul.mubr.f32.gmra.mrb[0].mxu0 %v103
  %v376 = vpop.f32.mrb[0].mxu0
  %v377 = vadd.f32 0.0, %v376
  %v378 = vpop.f32.mrb[0].mxu0
  %379 = vmatprep.mubr.f32.mxu0 0.0
  %380 = vmatmul.mubr.f32.gmra.mrb[0].mxu0 %v106
  %v381 = vpop.f32.mrb[0].mxu0
  %v382 = vadd.f32 0.0, %v381
  %v383 = vpop.f32.mrb[0].mxu0
  %384 = vmatprep.mubr.f32.mxu0 0.0
  %385 = vmatmul.mubr.f32.gmra.mrb[0].mxu0 %v109
  %v386 = vpop.f32.mrb[0].mxu0
  %v387 = vadd.f32 0.0, %v386
  %v388 = vpop.f32.mrb[0].mxu0
  %389 = vmatprep.mubr.f32.mxu0 0.0
  %390 = vmatmul.mubr.f32.gmra.mrb[0].mxu0 %v112
  %v391 = vpop.f32.mrb[0].mxu0
  %v392 = vadd.f32 0.0, %v391
  %v393 = vpop.f32.mrb[0].mxu0
  %394 = vmatprep.mubr.f32.mxu0 0.0
  %395 = vmatmul.mubr.f32.gmra.mrb[0].mxu0 %v115
  %v396 = vpop.f32.mrb[0].mxu0
  %v397 = vadd.f32 0.0, %v396
  %v398 = vpop.f32.mrb[0].mxu0
  %399 = vmatprep.mubr.f32.mxu0 0.0
  %400 = vmatmul.mubr.f32.gmra.mrb[0].mxu0 %v118
  %v401 = vpop.f32.mrb[0].mxu0
  %v402 = vadd.f32 0.0, %v401
  %v403 = vpop.f32.mrb[0].mxu0
  %404 = vmatprep.mubr.f32.mxu0 0.0
  %405 = vmatmul.mubr.f32.gmra.mrb[0].mxu0 %v121
  %v406 = vpop.f32.mrb[0].mxu0
  %v407 = vadd.f32 0.0, %v406
  %v408 = vpop.f32.mrb[0].mxu0
  %409 = vmatprep.mubr.f32.mxu0 0.0
  %410 = vmatmul.mubr.f32.gmra.mrb[0].mxu0 %v124
  %v411 = vpop.f32.mrb[0].mxu0
  %v412 = vadd.f32 0.0, %v411
  %v413 = vpop.f32.mrb[0].mxu0
  %414 = vmatprep.mubr.f32.mxu0 0.0
  %415 = vmatmul.mubr.f32.gmra.mrb[0].mxu0 %v127
  %v416 = vpop.f32.mrb[0].mxu0
  %v417 = vadd.f32 0.0, %v416
  %v418 = vpop.f32.mrb[0].mxu0
  %419 = vmatprep.mubr.f32.mxu0 0.0
  %420 = vmatmul.mubr.f32.gmra.mrb[0].mxu0 %v130
  %v421 = vpop.f32.mrb[0].mxu0
  %v422 = vadd.f32 0.0, %v421
  %v423 = vpop.f32.mrb[0].mxu0
  %424 = vmatprep.mubr.f32.mxu0 0.0
  %425 = vmatmul.mubr.f32.gmra.mrb[0].mxu0 %v133
  %v426 = vpop.f32.mrb[0].mxu0
  %v427 = vadd.f32 0.0, %v426
  %v428 = vpop.f32.mrb[0].mxu0
  %429 = vmatprep.mubr.f32.mxu0 0.0
  %430 = vmatmul.mubr.f32.gmra.mrb[0].mxu0 %v136
  %v431 = vpop.f32.mrb[0].mxu0
  %v432 = vadd.f32 0.0, %v431
  %v433 = vpop.f32.mrb[0].mxu0
  %434 = vmatprep.mubr.f32.mxu0 0.0
  %435 = vmatmul.mubr.f32.gmra.mrb[0].mxu0 %v139
  %v436 = vpop.f32.mrb[0].mxu0
  %v437 = vadd.f32 0.0, %v436
  %v438 = vpop.f32.mrb[0].mxu0
  %439 = vmatprep.mubr.f32.mxu0 0.0
  %440 = vmatmul.mubr.f32.gmra.mrb[0].mxu0 %v142
  %v441 = vpop.f32.mrb[0].mxu0
  %v442 = vadd.f32 0.0, %v441
  %v443 = vpop.f32.mrb[0].mxu0
  %444 = vmatprep.mubr.f32.mxu0 0.0
  %445 = vmatmul.mubr.f32.gmra.mrb[0].mxu0 %v145
  %v446 = vpop.f32.mrb[0].mxu0
  %v447 = vadd.f32 0.0, %v446
  %v448 = vpop.f32.mrb[0].mxu0
  %449 = vmatprep.mubr.f32.mxu0 0.0
  %450 = vmatmul.mubr.f32.gmra.mrb[0].mxu0 %v148
  %v451 = vpop.f32.mrb[0].mxu0
  %v452 = vadd.f32 0.0, %v451
  %v453 = vpop.f32.mrb[0].mxu0
  %454 = vmatprep.mubr.f32.mxu0 0.0
  %455 = vmatmul.mubr.f32.gmra.mrb[0].mxu0 %v151
  %v456 = vpop.f32.mrb[0].mxu0
  %v457 = vadd.f32 0.0, %v456
  %v458 = vpop.f32.mrb[0].mxu0
  %459 = vmatprep.mubr.f32.mxu0 0.0
  %460 = vmatmul.mubr.f32.gmra.mrb[0].mxu0 %v154
  %v461 = vpop.f32.mrb[0].mxu0
  %v462 = vadd.f32 0.0, %v461
  %v463 = vpop.f32.mrb[0].mxu0
  %464 = vmatprep.mubr.f32.mxu0 0.0
  %465 = vmatmul.mubr.f32.gmra.mrb[0].mxu0 %v157
  %v466 = vpop.f32.mrb[0].mxu0
  %v467 = vadd.f32 0.0, %v466
  %v468 = vpop.f32.mrb[0].mxu0
  %469 = vmatprep.mubr.f32.mxu0 0.0
  %470 = vmatmul.mubr.f32.gmra.mrb[0].mxu0 %v160
  %v471 = vpop.f32.mrb[0].mxu0
  %v472 = vadd.f32 0.0, %v471
  %v473 = vpop.f32.mrb[0].mxu0
  %474 = vmatprep.mubr.f32.mxu0 0.0
  %475 = vmatmul.mubr.f32.gmra.mrb[0].mxu0 %v163
  %v476 = vpop.f32.mrb[0].mxu0
  %v477 = vadd.f32 0.0, %v476
  %v478 = vpop.f32.mrb[0].mxu0
  %479 = vmatprep.mubr.f32.mxu0 0.0
  %480 = vmatmul.mubr.f32.gmra.mrb[0].mxu0 %v166
  %v481 = vpop.f32.mrb[0].mxu0
  %v482 = vadd.f32 0.0, %v481
  %v483 = vpop.f32.mrb[0].mxu0
  %484 = vmatprep.mubr.f32.mxu0 0.0
  %485 = vmatmul.mubr.f32.gmra.mrb[0].mxu0 %v169
  %v486 = vpop.f32.mrb[0].mxu0
  %v487 = vadd.f32 0.0, %v486
  %v488 = vpop.f32.mrb[0].mxu0
  %489 = vmatprep.mubr.f32.mxu0 0.0
  %490 = vmatmul.mubr.f32.gmra.mrb[0].mxu0 %v172
  %v491 = vpop.f32.mrb[0].mxu0
  %v492 = vadd.f32 0.0, %v491
  %v493 = vpop.f32.mrb[0].mxu0
  %494 = vmatprep.mubr.f32.mxu0 0.0
  %495 = vmatmul.mubr.f32.gmra.mrb[0].mxu0 %v175
  %v496 = vpop.f32.mrb[0].mxu0
  %v497 = vadd.f32 0.0, %v496
  %v498 = vpop.f32.mrb[0].mxu0
  %499 = vmatprep.mubr.f32.mxu0 0.0
  %500 = vmatmul.mubr.f32.gmra.mrb[0].mxu0 %v178
  %v501 = vpop.f32.mrb[0].mxu0
  %v502 = vadd.f32 0.0, %v501
  %v503 = vpop.f32.mrb[0].mxu0
  %504 = vmatprep.mubr.f32.mxu0 0.0
  %505 = vmatmul.mubr.f32.gmra.mrb[0].mxu0 %v181
  %v506 = vpop.f32.mrb[0].mxu0
  %v507 = vadd.f32 0.0, %v506
  %v508 = vpop.f32.mrb[0].mxu0
  %509 = vmatprep.mubr.f32.mxu0 0.0
  %510 = vmatmul.mubr.f32.gmra.mrb[0].mxu0 %v184
  %v511 = vpop.f32.mrb[0].mxu0
  %v512 = vadd.f32 0.0, %v511
  %v513 = vpop.f32.mrb[0].mxu0
  %514 = vmatprep.mubr.f32.mxu0 0.0
  %515 = vmatmul.mubr.f32.gmra.mrb[0].mxu0 %v187
  %v516 = vpop.f32.mrb[0].mxu0
  %v517 = vadd.f32 0.0, %v516
  %v518 = vpop.f32.mrb[0].mxu0
  %519 = vmatprep.mubr.f32.mxu0 0.0
  %520 = vmatmul.mubr.f32.gmra.mrb[0].mxu0 %v190
  %v521 = vpop.f32.mrb[0].mxu0
  %v522 = vadd.f32 0.0, %v521
  %v523 = vpop.f32.mrb[0].mxu0
  %524 = vmatprep.mubr.f32.mxu0 0.0
  %525 = vmatmul.mubr.f32.gmra.mrb[0].mxu0 %v193
  %v526 = vpop.f32.mrb[0].mxu0
  %v527 = vadd.f32 0.0, %v526
  %v528 = vpop.f32.mrb[0].mxu0
  %529 = vmatprep.mubr.f32.mxu0 0.0
  %530 = vmatmul.mubr.f32.gmra.mrb[0].mxu0 %v196
  %v531 = vpop.f32.mrb[0].mxu0
  %v532 = vadd.f32 0.0, %v531
  %v533 = vpop.f32.mrb[0].mxu0
  %534 = vmatprep.mubr.f32.mxu0 0.0
  %535 = vmatmul.mubr.f32.gmra.mrb[0].mxu0 %v199
  %v536 = vpop.f32.mrb[0].mxu0
  %v537 = vadd.f32 0.0, %v536
  %v538 = vpop.f32.mrb[0].mxu0
  %539 = vmatprep.mubr.f32.mxu0 0.0
  %540 = vmatmul.mubr.f32.gmra.mrb[0].mxu0 %v202
  %v541 = vpop.f32.mrb[0].mxu0
  %v542 = vadd.f32 0.0, %v541
  %v543 = vpop.f32.mrb[0].mxu0
  %544 = vmatprep.mubr.f32.mxu0 0.0
  %545 = vmatmul.mubr.f32.gmra.mrb[0].mxu0 %v205
  %v546 = vpop.f32.mrb[0].mxu0
  %v547 = vadd.f32 0.0, %v546
  %v548 = vpop.f32.mrb[0].mxu0
  %549 = vmatprep.mubr.f32.mxu0 0.0
  %550 = vmatmul.mubr.f32.gmra.mrb[0].mxu0 %v208
  %v551 = vpop.f32.mrb[0].mxu0
  %v552 = vadd.f32 0.0, %v551
  %v553 = vpop.f32.mrb[0].mxu0
  %554 = vmatprep.mubr.f32.mxu0 0.0
  %555 = vmatmul.mubr.f32.gmra.mrb[0].mxu0 %v211
  %v556 = vpop.f32.mrb[0].mxu0
  %v557 = vadd.f32 0.0, %v556
  %v558 = vpop.f32.mrb[0].mxu0
  %559 = vmatprep.mubr.f32.mxu0 0.0
  %560 = vmatmul.mubr.f32.gmra.mrb[0].mxu0 %v214
  %v561 = vpop.f32.mrb[0].mxu0
  %v562 = vadd.f32 0.0, %v561
  %v563 = vpop.f32.mrb[0].mxu0
  %564 = vmatprep.mubr.f32.mxu0 0.0
  %565 = vmatmul.mubr.f32.gmra.mrb[0].mxu0 %v217
  %v566 = vpop.f32.mrb[0].mxu0
  %v567 = vadd.f32 0.0, %v566
  %v568 = vpop.f32.mrb[0].mxu0
  %569 = vmatprep.mubr.f32.mxu0 0.0
  %570 = vmatmul.mubr.f32.gmra.mrb[0].mxu0 %v220
  %v571 = vpop.f32.mrb[0].mxu0
  %v572 = vadd.f32 0.0, %v571
  %v573 = vpop.f32.mrb[0].mxu0
  %574 = vmatprep.mubr.f32.mxu0 0.0
  %575 = vmatmul.mubr.f32.gmra.mrb[0].mxu0 %v223
  %v576 = vpop.f32.mrb[0].mxu0
  %v577 = vadd.f32 0.0, %v576
  %v578 = vpop.f32.mrb[0].mxu0
  %579 = vmatprep.mubr.f32.mxu0 0.0
  %580 = vmatmul.mubr.f32.gmra.mrb[0].mxu0 %v226
  %v581 = vpop.f32.mrb[0].mxu0
  %v582 = vadd.f32 0.0, %v581
  %v583 = vpop.f32.mrb[0].mxu0
  %584 = vmatprep.mubr.f32.mxu0 0.0
  %585 = vmatmul.mubr.f32.gmra.mrb[0].mxu0 %v229
  %v586 = vpop.f32.mrb[0].mxu0
  %v587 = vadd.f32 0.0, %v586
  %v588 = vpop.f32.mrb[0].mxu0
  %589 = vmatprep.mubr.f32.mxu0 0.0
  %590 = vmatmul.mubr.f32.gmra.mrb[0].mxu0 %v232
  %v591 = vpop.f32.mrb[0].mxu0
  %v592 = vadd.f32 0.0, %v591
  %v593 = vpop.f32.mrb[0].mxu0
  %594 = vmatprep.mubr.f32.mxu0 0.0
  %595 = vmatmul.mubr.f32.gmra.mrb[0].mxu0 %v235
  %v596 = vpop.f32.mrb[0].mxu0
  %v597 = vadd.f32 0.0, %v596
  %v598 = vpop.f32.mrb[0].mxu0
  %599 = vmatprep.mubr.f32.mxu0 0.0
  %600 = vmatmul.mubr.f32.gmra.mrb[0].mxu0 %v238
  %v601 = vpop.f32.mrb[0].mxu0
  %v602 = vadd.f32 0.0, %v601
  %v603 = vpop.f32.mrb[0].mxu0
  %604 = vmatprep.mubr.f32.mxu0 0.0
  %605 = vmatmul.mubr.f32.gmra.mrb[0].mxu0 %v241
  %v606 = vpop.f32.mrb[0].mxu0
  %v607 = vadd.f32 0.0, %v606
  %v608 = vpop.f32.mrb[0].mxu0
  %609 = vmatprep.mubr.f32.mxu0 0.0
  %610 = vmatmul.mubr.f32.gmra.mrb[0].mxu0 %v244
  %v611 = vpop.f32.mrb[0].mxu0
  %v612 = vadd.f32 0.0, %v611
  %v613 = vpop.f32.mrb[0].mxu0
  %614 = vmatprep.mubr.f32.mxu0 0.0
  %615 = vmatmul.mubr.f32.gmra.mrb[0].mxu0 %v247
  %v616 = vpop.f32.mrb[0].mxu0
  %v617 = vadd.f32 0.0, %v616
  %v618 = vpop.f32.mrb[0].mxu0
  %619 = vmatprep.mubr.f32.mxu0 0.0
  %620 = vmatmul.mubr.f32.gmra.mrb[0].mxu0 %v250
  %v621 = vpop.f32.mrb[0].mxu0
  %v622 = vadd.f32 0.0, %v621
  %v623 = vpop.f32.mrb[0].mxu0
  %624 = vmatprep.mubr.f32.mxu0 0.0
  %625 = vmatmul.mubr.f32.gmra.mrb[0].mxu0 %v253
  %v626 = vpop.f32.mrb[0].mxu0
  %v627 = vadd.f32 0.0, %v626
  %v628 = vpop.f32.mrb[0].mxu0
  %629 = vmatprep.mubr.f32.mxu0 0.0
  %630 = vmatmul.mubr.f32.gmra.mrb[0].mxu0 %v256
  %v631 = vpop.f32.mrb[0].mxu0
  %v632 = vadd.f32 0.0, %v631
  %v633 = vpop.f32.mrb[0].mxu0
  %634 = vmatprep.mubr.f32.mxu0 0.0
  %635 = vmatmul.mubr.f32.gmra.mrb[0].mxu0 %v259
  %v636 = vpop.f32.mrb[0].mxu0
  %v637 = vadd.f32 0.0, %v636
  %v638 = vpop.f32.mrb[0].mxu0
  %639 = vmatprep.mubr.f32.mxu0 0.0
  %640 = vmatmul.mubr.f32.gmra.mrb[0].mxu0 %v262
  %v641 = vpop.f32.mrb[0].mxu0
  %v642 = vadd.f32 0.0, %v641
  %v643 = vpop.f32.mrb[0].mxu0
  %644 = vmatprep.mubr.f32.mxu0 0.0
  %645 = vmatmul.mubr.f32.gmra.mrb[0].mxu0 %v265
  %v646 = vpop.f32.mrb[0].mxu0
  %v647 = vadd.f32 0.0, %v646
  %v648 = vpop.f32.mrb[0].mxu0
  %649 = vmatprep.mubr.f32.mxu0 0.0
  %650 = vmatmul.mubr.f32.gmra.mrb[0].mxu0 %v268
  %v651 = vpop.f32.mrb[0].mxu0
  %v652 = vadd.f32 0.0, %v651
  %v653 = vpop.f32.mrb[0].mxu0
  %654 = vdwg.mxu0
  %v655 = vmax.f32 %v337, %v357
  %v656 = vmax.f32 %v342, %v362
  %v657 = vmax.f32 %v347, %v367
  %v658 = vmax.f32 %v352, %v372
  %v659 = vmax.f32 %v655, %v377
  %v660 = vmax.f32 %v656, %v382
  %v661 = vmax.f32 %v657, %v387
  %v662 = vmax.f32 %v658, %v392
  %v663 = vmax.f32 %v659, %v397
  %v664 = vmax.f32 %v660, %v402
  %v665 = vmax.f32 %v661, %v407
  %v666 = vmax.f32 %v662, %v412
  %v667 = vmax.f32 %v663, %v417
  %v668 = vmax.f32 %v664, %v422
  %v669 = vmax.f32 %v665, %v427
  %v670 = vmax.f32 %v666, %v432
  %v671 = vmax.f32 %v667, %v437
  %v672 = vmax.f32 %v668, %v442
  %v673 = vmax.f32 %v669, %v447
  %v674 = vmax.f32 %v670, %v452
  %v675 = vmax.f32 %v671, %v457
  %v676 = vmax.f32 %v672, %v462
  %v677 = vmax.f32 %v673, %v467
  %v678 = vmax.f32 %v674, %v472
  %v679 = vmax.f32 %v675, %v477
  %v680 = vmax.f32 %v676, %v482
  %v681 = vmax.f32 %v677, %v487
  %v682 = vmax.f32 %v678, %v492
  %v683 = vmax.f32 %v679, %v497
  %v684 = vmax.f32 %v680, %v502
  %v685 = vmax.f32 %v681, %v507
  %v686 = vmax.f32 %v682, %v512
  %v687 = vmax.f32 %v683, %v517
  %v688 = vmax.f32 %v684, %v522
  %v689 = vmax.f32 %v685, %v527
  %v690 = vmax.f32 %v686, %v532
  %v691 = vmax.f32 %v687, %v537
  %v692 = vmax.f32 %v688, %v542
  %v693 = vmax.f32 %v689, %v547
  %v694 = vmax.f32 %v690, %v552
  %v695 = vmax.f32 %v691, %v557
  %v696 = vmax.f32 %v692, %v562
  %v697 = vmax.f32 %v693, %v567
  %v698 = vmax.f32 %v694, %v572
  %v699 = vmax.f32 %v695, %v577
  %v700 = vmax.f32 %v696, %v582
  %v701 = vmax.f32 %v697, %v587
  %v702 = vmax.f32 %v698, %v592
  %v703 = vmax.f32 %v699, %v597
  %v704 = vmax.f32 %v700, %v602
  %v705 = vmax.f32 %v701, %v607
  %v706 = vmax.f32 %v702, %v612
  %v707 = vmax.f32 %v703, %v617
  %v708 = vmax.f32 %v704, %v622
  %v709 = vmax.f32 %v705, %v627
  %v710 = vmax.f32 %v706, %v632
  %v711 = vmax.f32 %v707, %v637
  %v712 = vmax.f32 %v708, %v642
  %v713 = vmax.f32 %v709, %v647
  %v714 = vmax.f32 %v710, %v652
  %v715 = vmax.f32 %v711, %v712
  %v716 = vmax.f32 %v713, %v714
  %v717 = vmax.f32 %v715, %v716
  %v718 = vrot.slane %v717, 4
  %v719 = vmax.f32 %v717, %v718
  %v720 = vrot.slane %v719, 2
  %v721 = vmax.f32 %v719, %v720
  %v722 = vrot.slane %v721, 1
  %v723 = vmax.f32 %v721, %v722
  %v724 = vsub.f32 0.0, %v723
  %v725 = vmul.f32 %v724, 1.442695
  %v726 = vpow.pop %v725
  %v727 = vadd.f32 %v726, 1.0
  %v728 = vrcp.pop %v727
  %v729 = vmul.f32 1.0, %v728
  %730 = vst [vmem:[%s2] sm:$0x1] %v729
  // Predicated region
  $region10: #{conv1_model_forward.1} parent=0 // pred_check
    _
  $region11: #{conv1_model_forward.1} parent=0 // pred_check_branch
    %732 = sbr.rel (0) target = $region13
  $region12: #{conv1_model_forward.1} parent=0 // pred_region
    _
  $region13: #{conv1_model_forward.1} parent=0 // pred_fallthru
    _
  // Predicated region
  $region14: #{conv1_model_forward.1} parent=0 // pred_check
    _
  $region15: #{conv1_model_forward.1} parent=0 // pred_check_branch
    %734 = sbr.rel (0) target = $region17
  $region16: #{conv1_model_forward.1} parent=0 // pred_region
    _
  $region17: #{conv1_model_forward.1} parent=0 // pred_fallthru
    _

</llo_original>
